<compile_context>
chip_gen: v6e
topology: v6e:2x2x1
jax: 0.10.0
libtpu: 0.0.40
codegen_flags: <defaults>
</compile_context>

<pallas_src>
import functools

import jax
import jax.numpy as jnp
from jax import lax
from jax.experimental import pallas as pl
from jax.experimental.pallas import tpu as pltpu


def _interp_matrix(out_size: int, in_size: int) -> jnp.ndarray:
    """Dense (out_size, in_size) 1-D bilinear interpolation matrix.

    Matches torch.nn.functional.interpolate(mode='bilinear',
    align_corners=False) along one axis: half-pixel source coords, clamped to
    >= 0, right neighbor clamped to in_size - 1.
    """
    i = jnp.arange(out_size, dtype=jnp.float32)
    scale = in_size / out_size
    src = jnp.clip((i + 0.5) * scale - 0.5, 0.0, None)
    i0 = jnp.clip(jnp.floor(src).astype(jnp.int32), 0, in_size - 1)
    lam = src - i0.astype(jnp.float32)
    i1 = jnp.minimum(i0 + 1, in_size - 1)
    w = (jax.nn.one_hot(i0, in_size, dtype=jnp.float32) * (1.0 - lam)[:, None]
         + jax.nn.one_hot(i1, in_size, dtype=jnp.float32) * lam[:, None])
    return w


def _fuse_sum_kernel(num_extra, tc, hpads, offs, *refs):
    """refs = (f0, [f_k, wwt_k] * num_extra, wh_cat, out, t_scratch).

      f0     : (TC, Ho, Wo)
      f_k    : (TC*Hk_pad, Wk)   coarse level, channel-folded rows
      wwt_k  : (Wk, Wo)          pre-transposed width interp matrix
      wh_cat : (Ho, sumH)        height interp matrices, concatenated over levels
      out    : (TC, Ho, Wo)
      t      : (TC, sumH, Wo)    VMEM scratch, channel-major W-pass results
    """
    f0_ref = refs[0]
    wh_ref = refs[1 + 2 * num_extra]
    o_ref = refs[2 + 2 * num_extra]
    t_ref = refs[3 + 2 * num_extra]
    wo = o_ref.shape[2]

    # ---- Phase A: W-pass, one MXU matmul per level (channels folded into M),
    # stored channel-major so the H-pass reads one contiguous slice per channel.
    for k in range(num_extra):
        f_ref = refs[1 + 2 * k]
        wwt_ref = refs[2 + 2 * k]
        hk = hpads[k]
        off = offs[k]
        tk = jnp.dot(f_ref[...], wwt_ref[...],
                     preferred_element_type=jnp.float32)            # (TC*hk, Wo)
        t_ref[:, off:off + hk, :] = tk.reshape(tc, hk, wo).astype(t_ref.dtype)

    # ---- Phase B: per-channel merged H-pass (single matmul, K = sumH); f0 is
    # added in f32 and the output plane is written exactly once per channel.
    wh = wh_ref[...]                                                # hoisted

    def body(c, carry):
        up = jnp.dot(wh, t_ref[c], preferred_element_type=jnp.float32)  # (Ho, Wo)
        o_ref[c] = (f0_ref[c].astype(jnp.float32) + up).astype(o_ref.dtype)
        return carry

    lax.fori_loop(0, tc, body, 0, unroll=min(4, max(tc, 1)))


def _vmem_capacity_bytes() -> int:
    try:
        cap = getattr(pltpu.get_tpu_info(), "vmem_capacity_bytes", None)
        if cap:
            return int(cap)
    except Exception:
        pass
    return 64 * 1024 * 1024   # conservative (v7x-sized) fallback


def _pick_channel_block(bc, per_chan_bytes, fixed_bytes, usable_vmem):
    """Largest divisor of BC that (a) fits the VMEM model and (b) leaves at
    least min(BC, 4) grid steps; prefer an even step count (v7x 2-TC sharding)."""
    budget = max(usable_vmem - fixed_bytes, per_chan_bytes)
    cap = max(1, budget // max(per_chan_bytes, 1))
    min_steps = min(bc, 4)
    divs = [d for d in range(1, bc + 1) if bc % d == 0]
    feas = [d for d in divs if d <= cap and bc // d >= min_steps]
    if not feas:
        return 1
    even = [d for d in feas if (bc // d) % 2 == 0]
    return max(even) if even else max(feas)


def fpn_fuse_sum(features):
    """features: list of NCHW arrays sharing N and C.  Returns NCHW array."""
    features = list(features)
    f0 = features[0]
    B, C, Ho, Wo = map(int, f0.shape)
    if len(features) == 1:
        return f0

    BC = B * C
    dtype = f0.dtype
    itemsize = jnp.dtype(dtype).itemsize
    sub = {4: 8, 2: 16, 1: 32}.get(itemsize, 8)   # sublane row multiple per dtype
    num_extra = len(features) - 1

    # ---- Host-side per-level preprocessing: pad Hk to the sublane multiple
    # (zero rows in f_k, matching zero columns in Wh_k -> result unchanged),
    # build interp matrices, concat Wh across levels.
    slabs, wwts, wh_cols, hpads, offs, wks = [], [], [], [], [], []
    off = 0
    for f in features[1:]:
        _, _, Hk, Wk = map(int, f.shape)
        hk_pad = ((Hk + sub - 1) // sub) * sub
        wh = _interp_matrix(Ho, Hk)
        if hk_pad != Hk:
            wh = jnp.pad(wh, ((0, 0), (0, hk_pad - Hk)))
            f = jnp.pad(f, ((0, 0), (0, 0), (0, hk_pad - Hk), (0, 0)))
        slabs.append(f.reshape(BC * hk_pad, Wk))
        wwts.append(_interp_matrix(Wo, Wk).T.astype(dtype))         # (Wk, Wo)
        wh_cols.append(wh)
        hpads.append(hk_pad)
        offs.append(off)
        wks.append(Wk)
        off += hk_pad
    sumH = off
    wh_cat = jnp.concatenate(wh_cols, axis=1).astype(dtype)          # (Ho, sumH)

    # ---- VMEM model (per block of TC channel planes) and channel-block pick.
    cap = _vmem_capacity_bytes()
    usable = int(cap * 0.70)
    per_chan = (2 * itemsize * (2 * Ho * Wo + sum(hp * wk for hp, wk in zip(hpads, wks)))
                + itemsize * sumH * Wo            # W-pass scratch (single-buffered)
                + 4 * max(hpads) * Wo)            # largest f32 dot intermediate
    fixed = 2 * itemsize * (Ho * sumH + sum(wk * Wo for wk in wks))
    TC = _pick_channel_block(BC, per_chan, fixed, usable)
    grid = (BC // TC,)
    vmem_limit = max(32 * 1024 * 1024, min(int(cap * 0.8), 100 * 1024 * 1024))

    # ---- Build args + BlockSpecs.  Interp-matrix index maps are grid-invariant
    # so they stay VMEM-resident across all grid steps.
    args = [f0.reshape(BC, Ho, Wo)]
    in_specs = [pl.BlockSpec((TC, Ho, Wo), lambda i: (i, 0, 0))]
    for slab, wwt, hp, wk in zip(slabs, wwts, hpads, wks):
        args.append(slab)
        args.append(wwt)
        in_specs.append(pl.BlockSpec((TC * hp, wk), lambda i: (i, 0)))
        in_specs.append(pl.BlockSpec((wk, Wo), lambda i: (0, 0)))
    args.append(wh_cat)
    in_specs.append(pl.BlockSpec((Ho, sumH), lambda i: (0, 0)))

    flops = 2 * BC * (sum(hp * wk * Wo for hp, wk in zip(hpads, wks)) + Ho * sumH * Wo)
    bytes_acc = (2 * BC * Ho * Wo * itemsize
                 + sum(int(s.size) for s in slabs) * itemsize
                 + (int(wh_cat.size) + sum(int(w.size) for w in wwts)) * itemsize)
    cost = pl.CostEstimate(flops=int(flops), transcendentals=0,
                           bytes_accessed=int(bytes_acc))

    kernel = functools.partial(_fuse_sum_kernel, num_extra, TC,
                               tuple(hpads), tuple(offs))
    out = pl.pallas_call(
        kernel,
        out_shape=jax.ShapeDtypeStruct((BC, Ho, Wo), dtype),
        grid=grid,
        in_specs=in_specs,
        out_specs=pl.BlockSpec((TC, Ho, Wo), lambda i: (i, 0, 0)),
        scratch_shapes=[pltpu.VMEM((TC, sumH, Wo), dtype)],
        compiler_params=pltpu.CompilerParams(
            dimension_semantics=("parallel",),
            vmem_limit_bytes=vmem_limit,
        ),
        cost_estimate=cost,
    )(*args)
    return out.reshape(B, C, Ho, Wo)


def _reference(features):
    """Pure-JAX reference (einsum form of the same exact bilinear resize)."""
    out = features[0].astype(jnp.float32)
    _, _, Ho, Wo = features[0].shape
    for f in features[1:]:
        _, _, Hk, Wk = f.shape
        wh = _interp_matrix(Ho, Hk)
        ww = _interp_matrix(Wo, Wk)
        out = out + jnp.einsum("oh,bchw,pw->bcop", wh, f.astype(jnp.float32), ww)
    return out.astype(features[0].dtype)


if __name__ == "__main__":
    key = jax.random.PRNGKey(0)
    k0, k1, k2 = jax.random.split(key, 3)
    # Small FPN pyramid: shared N, C; decreasing spatial sizes.
    f0 = jax.random.normal(k0, (2, 8, 32, 32), dtype=jnp.float32)
    f1 = jax.random.normal(k1, (2, 8, 16, 16), dtype=jnp.float32)
    f2 = jax.random.normal(k2, (2, 8, 8, 8), dtype=jnp.float32)
    features = [f0, f1, f2]

    out = fpn_fuse_sum(features)
    jax.block_until_ready(out)

    ref = _reference(features)
    assert out.shape == ref.shape == (2, 8, 32, 32)
    assert out.dtype == f0.dtype
    err = float(jnp.max(jnp.abs(out - ref)))
    assert err < 1e-4, f"mismatch vs reference: {err}"
    print("KERNEL_OK")
</pallas_src>

<mosaic_0001>
module attributes {stable_mosaic.version = 11 : i64} {
  func.func @_fuse_sum_kernel(%arg0: i32, %arg1: memref<4x32x32xf32, #tpu.memory_space<vmem>>, %arg2: memref<64x16xf32, #tpu.memory_space<vmem>>, %arg3: memref<16x32xf32, #tpu.memory_space<vmem>>, %arg4: memref<32x8xf32, #tpu.memory_space<vmem>>, %arg5: memref<8x32xf32, #tpu.memory_space<vmem>>, %arg6: memref<32x24xf32, #tpu.memory_space<vmem>>, %arg7: memref<4x32x32xf32, #tpu.memory_space<vmem>>, %arg8: memref<4x24x32xf32, #tpu.memory_space<vmem>>) attributes {dimension_semantics = [#tpu.dimension_semantics<parallel>], iteration_bounds = array<i64: 4>, scalar_prefetch = 0 : i64, scratch_operands = 1 : i64, tpu.core_type = #tpu.core_type<tc>, window_params = [{transform_indices = @transform_0, window_bounds = array<i64: 4, 32, 32>}, {transform_indices = @transform_1, window_bounds = array<i64: 64, 16>}, {pipeline_mode = #tpu.pipeline_mode<synchronous>, transform_indices = @transform_2, window_bounds = array<i64: 16, 32>}, {transform_indices = @transform_3, window_bounds = array<i64: 32, 8>}, {pipeline_mode = #tpu.pipeline_mode<synchronous>, transform_indices = @transform_4, window_bounds = array<i64: 8, 32>}, {pipeline_mode = #tpu.pipeline_mode<synchronous>, transform_indices = @transform_5, window_bounds = array<i64: 32, 24>}, {transform_indices = @transform_6, window_bounds = array<i64: 4, 32, 32>}]} {
    %c0 = arith.constant 0 : index
    %c0_0 = arith.constant 0 : index
    %0 = vector.load %arg2[%c0, %c0_0] : memref<64x16xf32, #tpu.memory_space<vmem>>, vector<64x16xf32>
    %c0_1 = arith.constant 0 : index
    %c0_2 = arith.constant 0 : index
    %1 = vector.load %arg3[%c0_1, %c0_2] : memref<16x32xf32, #tpu.memory_space<vmem>>, vector<16x32xf32>
    %cst = arith.constant dense<0.000000e+00> : vector<64x32xf32>
    %2 = tpu.matmul %0, %1, %cst {dimension_numbers = #tpu.dot_dimension_numbers<[1], [0], [0], [1], [0, 0, 1, 1], [], []>} : vector<64x16xf32>, vector<16x32xf32>, vector<64x32xf32> -> vector<64x32xf32>
    %3 = vector.shape_cast %2 : vector<64x32xf32> to vector<4x16x32xf32>
    %c0_3 = arith.constant 0 : index
    %c0_4 = arith.constant 0 : index
    %c0_5 = arith.constant 0 : index
    %4 = vector.load %arg8[%c0_3, %c0_4, %c0_5] : memref<4x24x32xf32, #tpu.memory_space<vmem>>, vector<4x16x32xf32>
    tpu.vector_store %arg8[%c0_3, %c0_4, %c0_5], %3 {strides = array<i32>} : memref<4x24x32xf32, #tpu.memory_space<vmem>>, vector<4x16x32xf32>,
    %c0_6 = arith.constant 0 : index
    %c0_7 = arith.constant 0 : index
    %5 = vector.load %arg4[%c0_6, %c0_7] : memref<32x8xf32, #tpu.memory_space<vmem>>, vector<32x8xf32>
    %c0_8 = arith.constant 0 : index
    %c0_9 = arith.constant 0 : index
    %6 = vector.load %arg5[%c0_8, %c0_9] : memref<8x32xf32, #tpu.memory_space<vmem>>, vector<8x32xf32>
    %cst_10 = arith.constant dense<0.000000e+00> : vector<32x32xf32>
    %7 = tpu.matmul %5, %6, %cst_10 {dimension_numbers = #tpu.dot_dimension_numbers<[1], [0], [0], [1], [0, 0, 1, 1], [], []>} : vector<32x8xf32>, vector<8x32xf32>, vector<32x32xf32> -> vector<32x32xf32>
    %8 = vector.shape_cast %7 : vector<32x32xf32> to vector<4x8x32xf32>
    %c0_11 = arith.constant 0 : index
    %c16 = arith.constant 16 : index
    %c0_12 = arith.constant 0 : index
    %9 = vector.load %arg8[%c0_11, %c16, %c0_12] : memref<4x24x32xf32, #tpu.memory_space<vmem>>, vector<4x8x32xf32>
    tpu.vector_store %arg8[%c0_11, %c16, %c0_12], %8 {strides = array<i32>} : memref<4x24x32xf32, #tpu.memory_space<vmem>>, vector<4x8x32xf32>,
    %c0_13 = arith.constant 0 : index
    %c0_14 = arith.constant 0 : index
    %10 = vector.load %arg6[%c0_13, %c0_14] : memref<32x24xf32, #tpu.memory_space<vmem>>, vector<32x24xf32>
    %c0_i32 = arith.constant 0 : i32
    %11 = arith.index_cast %c0_i32 : i32 to index
    %c0_15 = arith.constant 0 : index
    %c0_16 = arith.constant 0 : index
    %12 = vector.load %arg8[%11, %c0_15, %c0_16] : memref<4x24x32xf32, #tpu.memory_space<vmem>>, vector<1x24x32xf32>
    %13 = vector.shape_cast %12 : vector<1x24x32xf32> to vector<24x32xf32>
    %cst_17 = arith.constant dense<0.000000e+00> : vector<32x32xf32>
    %14 = tpu.matmul %10, %13, %cst_17 {dimension_numbers = #tpu.dot_dimension_numbers<[1], [0], [0], [1], [0, 0, 1, 1], [], []>} : vector<32x24xf32>, vector<24x32xf32>, vector<32x32xf32> -> vector<32x32xf32>
    %15 = arith.index_cast %c0_i32 : i32 to index
    %c0_18 = arith.constant 0 : index
    %c0_19 = arith.constant 0 : index
    %16 = vector.load %arg1[%15, %c0_18, %c0_19] : memref<4x32x32xf32, #tpu.memory_space<vmem>>, vector<1x32x32xf32>
    %17 = vector.shape_cast %16 : vector<1x32x32xf32> to vector<32x32xf32>
    %18 = arith.addf %17, %14 : vector<32x32xf32>
    %19 = arith.index_cast %c0_i32 : i32 to index
    %c0_20 = arith.constant 0 : index
    %c0_21 = arith.constant 0 : index
    %20 = vector.load %arg7[%19, %c0_20, %c0_21] : memref<4x32x32xf32, #tpu.memory_space<vmem>>, vector<1x32x32xf32>
    %21 = vector.shape_cast %20 : vector<1x32x32xf32> to vector<32x32xf32>
    %22 = vector.shape_cast %18 : vector<32x32xf32> to vector<1x32x32xf32>
    tpu.vector_store %arg7[%19, %c0_20, %c0_21], %22 {strides = array<i32>} : memref<4x32x32xf32, #tpu.memory_space<vmem>>, vector<1x32x32xf32>,
    %c1_i32 = arith.constant 1 : i32
    %23 = arith.index_cast %c1_i32 : i32 to index
    %c0_22 = arith.constant 0 : index
    %c0_23 = arith.constant 0 : index
    %24 = vector.load %arg8[%23, %c0_22, %c0_23] : memref<4x24x32xf32, #tpu.memory_space<vmem>>, vector<1x24x32xf32>
    %25 = vector.shape_cast %24 : vector<1x24x32xf32> to vector<24x32xf32>
    %cst_24 = arith.constant dense<0.000000e+00> : vector<32x32xf32>
    %26 = tpu.matmul %10, %25, %cst_24 {dimension_numbers = #tpu.dot_dimension_numbers<[1], [0], [0], [1], [0, 0, 1, 1], [], []>} : vector<32x24xf32>, vector<24x32xf32>, vector<32x32xf32> -> vector<32x32xf32>
    %27 = arith.index_cast %c1_i32 : i32 to index
    %c0_25 = arith.constant 0 : index
    %c0_26 = arith.constant 0 : index
    %28 = vector.load %arg1[%27, %c0_25, %c0_26] : memref<4x32x32xf32, #tpu.memory_space<vmem>>, vector<1x32x32xf32>
    %29 = vector.shape_cast %28 : vector<1x32x32xf32> to vector<32x32xf32>
    %30 = arith.addf %29, %26 : vector<32x32xf32>
    %31 = arith.index_cast %c1_i32 : i32 to index
    %c0_27 = arith.constant 0 : index
    %c0_28 = arith.constant 0 : index
    %32 = vector.load %arg7[%31, %c0_27, %c0_28] : memref<4x32x32xf32, #tpu.memory_space<vmem>>, vector<1x32x32xf32>
    %33 = vector.shape_cast %32 : vector<1x32x32xf32> to vector<32x32xf32>
    %34 = vector.shape_cast %30 : vector<32x32xf32> to vector<1x32x32xf32>
    tpu.vector_store %arg7[%31, %c0_27, %c0_28], %34 {strides = array<i32>} : memref<4x32x32xf32, #tpu.memory_space<vmem>>, vector<1x32x32xf32>,
    %c2_i32 = arith.constant 2 : i32
    %35 = arith.index_cast %c2_i32 : i32 to index
    %c0_29 = arith.constant 0 : index
    %c0_30 = arith.constant 0 : index
    %36 = vector.load %arg8[%35, %c0_29, %c0_30] : memref<4x24x32xf32, #tpu.memory_space<vmem>>, vector<1x24x32xf32>
    %37 = vector.shape_cast %36 : vector<1x24x32xf32> to vector<24x32xf32>
    %cst_31 = arith.constant dense<0.000000e+00> : vector<32x32xf32>
    %38 = tpu.matmul %10, %37, %cst_31 {dimension_numbers = #tpu.dot_dimension_numbers<[1], [0], [0], [1], [0, 0, 1, 1], [], []>} : vector<32x24xf32>, vector<24x32xf32>, vector<32x32xf32> -> vector<32x32xf32>
    %39 = arith.index_cast %c2_i32 : i32 to index
    %c0_32 = arith.constant 0 : index
    %c0_33 = arith.constant 0 : index
    %40 = vector.load %arg1[%39, %c0_32, %c0_33] : memref<4x32x32xf32, #tpu.memory_space<vmem>>, vector<1x32x32xf32>
    %41 = vector.shape_cast %40 : vector<1x32x32xf32> to vector<32x32xf32>
    %42 = arith.addf %41, %38 : vector<32x32xf32>
    %43 = arith.index_cast %c2_i32 : i32 to index
    %c0_34 = arith.constant 0 : index
    %c0_35 = arith.constant 0 : index
    %44 = vector.load %arg7[%43, %c0_34, %c0_35] : memref<4x32x32xf32, #tpu.memory_space<vmem>>, vector<1x32x32xf32>
    %45 = vector.shape_cast %44 : vector<1x32x32xf32> to vector<32x32xf32>
    %46 = vector.shape_cast %42 : vector<32x32xf32> to vector<1x32x32xf32>
    tpu.vector_store %arg7[%43, %c0_34, %c0_35], %46 {strides = array<i32>} : memref<4x32x32xf32, #tpu.memory_space<vmem>>, vector<1x32x32xf32>,
    %c3_i32 = arith.constant 3 : i32
    %47 = arith.index_cast %c3_i32 : i32 to index
    %c0_36 = arith.constant 0 : index
    %c0_37 = arith.constant 0 : index
    %48 = vector.load %arg8[%47, %c0_36, %c0_37] : memref<4x24x32xf32, #tpu.memory_space<vmem>>, vector<1x24x32xf32>
    %49 = vector.shape_cast %48 : vector<1x24x32xf32> to vector<24x32xf32>
    %cst_38 = arith.constant dense<0.000000e+00> : vector<32x32xf32>
    %50 = tpu.matmul %10, %49, %cst_38 {dimension_numbers = #tpu.dot_dimension_numbers<[1], [0], [0], [1], [0, 0, 1, 1], [], []>} : vector<32x24xf32>, vector<24x32xf32>, vector<32x32xf32> -> vector<32x32xf32>
    %51 = arith.index_cast %c3_i32 : i32 to index
    %c0_39 = arith.constant 0 : index
    %c0_40 = arith.constant 0 : index
    %52 = vector.load %arg1[%51, %c0_39, %c0_40] : memref<4x32x32xf32, #tpu.memory_space<vmem>>, vector<1x32x32xf32>
    %53 = vector.shape_cast %52 : vector<1x32x32xf32> to vector<32x32xf32>
    %54 = arith.addf %53, %50 : vector<32x32xf32>
    %55 = arith.index_cast %c3_i32 : i32 to index
    %c0_41 = arith.constant 0 : index
    %c0_42 = arith.constant 0 : index
    %56 = vector.load %arg7[%55, %c0_41, %c0_42] : memref<4x32x32xf32, #tpu.memory_space<vmem>>, vector<1x32x32xf32>
    %57 = vector.shape_cast %56 : vector<1x32x32xf32> to vector<32x32xf32>
    %58 = vector.shape_cast %54 : vector<32x32xf32> to vector<1x32x32xf32>
    tpu.vector_store %arg7[%55, %c0_41, %c0_42], %58 {strides = array<i32>} : memref<4x32x32xf32, #tpu.memory_space<vmem>>, vector<1x32x32xf32>,
    %c4_i32 = arith.constant 4 : i32
    return
  }
  func.func @transform_0(%arg0: i32) -> (i32, i32, i32) {
    %c0_i32 = arith.constant 0 : i32
    %c0_i32_0 = arith.constant 0 : i32
    %c0_i32_1 = arith.constant 0 : i32
    return %arg0, %c0_i32, %c0_i32_0 : i32, i32, i32
  }
  func.func @transform_1(%arg0: i32) -> (i32, i32) {
    %c0_i32 = arith.constant 0 : i32
    %c0_i32_0 = arith.constant 0 : i32
    return %arg0, %c0_i32 : i32, i32
  }
  func.func @transform_2(%arg0: i32) -> (i32, i32) {
    %c0_i32 = arith.constant 0 : i32
    %c0_i32_0 = arith.constant 0 : i32
    %c0_i32_1 = arith.constant 0 : i32
    return %c0_i32, %c0_i32_0 : i32, i32
  }
  func.func @transform_3(%arg0: i32) -> (i32, i32) {
    %c0_i32 = arith.constant 0 : i32
    %c0_i32_0 = arith.constant 0 : i32
    return %arg0, %c0_i32 : i32, i32
  }
  func.func @transform_4(%arg0: i32) -> (i32, i32) {
    %c0_i32 = arith.constant 0 : i32
    %c0_i32_0 = arith.constant 0 : i32
    %c0_i32_1 = arith.constant 0 : i32
    return %c0_i32, %c0_i32_0 : i32, i32
  }
  func.func @transform_5(%arg0: i32) -> (i32, i32) {
    %c0_i32 = arith.constant 0 : i32
    %c0_i32_0 = arith.constant 0 : i32
    %c0_i32_1 = arith.constant 0 : i32
    return %c0_i32, %c0_i32_0 : i32, i32
  }
  func.func @transform_6(%arg0: i32) -> (i32, i32, i32) {
    %c0_i32 = arith.constant 0 : i32
    %c0_i32_0 = arith.constant 0 : i32
    %c0_i32_1 = arith.constant 0 : i32
    return %arg0, %c0_i32, %c0_i32_0 : i32, i32, i32
  }
}

</mosaic_0001>

<llo_original>
// kernel: tpu_custom_call.1
$region0: #{tpu_custom_call.1}
  #allocation0 [shape = 'u32[]', space=smem, size = 0x4, offset = 0x4, fixed_abs, tag = 'smem constant byte address 0x4 - core index']
  #allocation1 [shape = 'u32[144,128]{1,0:T(1,128)}', space=vmem, size = 0x12000, scoped, tag = 'internal scratch']
  #allocation2 [shape = 'f32[4,24,32]{2,1,0:T(8,128)}', space=vmem, size = 0xc000, scoped, tag = 'scratch operand']
  %s0 = inlined_call_operand.hbm [shape: f32[16,32,32], index: 0, kind: input, shape index: {}]
  %s1 = inlined_call_operand.vmem [shape: f32[256,16], index: 1, kind: input, shape index: {}]
  %s2 = inlined_call_operand.vmem [shape: f32[16,32], index: 2, kind: input, shape index: {}]
  %s3 = inlined_call_operand.vmem [shape: f32[128,8], index: 3, kind: input, shape index: {}]
  %s4 = inlined_call_operand.vmem [shape: f32[8,32], index: 4, kind: input, shape index: {}]
  %s5 = inlined_call_operand.vmem [shape: f32[32,24], index: 5, kind: input, shape index: {}]
  %s6 = inlined_call_operand.hbm [shape: f32[16,32,32], index: 6, kind: output, shape index: {}]
  %s7 = sld [smem:[#allocation0]]
  $region61: #{tpu_custom_call.1} parent=0
    _
  %s9 = ssub.s32 1, %s7
  %s10 = scalar_select 0, %s9, %s7
  $region1: #{tpu_custom_call.1} parent=0
    #allocation3 [shape = 'u8[131072]{0}', space=vmem, size = 0x20000, scoped, tag = 'input window, operand 0']
    #allocation4 [shape = 's32[2]{0}', space=sflag, size = 0x8, scoped, tag = 'scoped memory for tpu_custom_call.1']
    #allocation5 [shape = 's32[2]{0}', space=sflag, size = 0x8, scoped, tag = 'scoped memory for tpu_custom_call.1']
    #allocation6 [shape = 'u8[131072]{0}', space=vmem, size = 0x20000, scoped, tag = 'output window, operand 0']
    %11 = vsyncpa [#allocation4], 0
    %s12 = scalar_lea.sflag [#allocation4], 1
    %13 = vsyncpa %s12, 0
    %14 = vsyncpa [#allocation5], 0
    %s15 = scalar_lea.sflag [#allocation5], 1
    %16 = vsyncpa %s15, 0
    loop: start=0, step=1, limit=6
    $region2: #{tpu_custom_call.1} parent=1 // loop_pre_header
      _
    $region3: #{tpu_custom_call.1} parent=1 // loop_header
      %s18 = sphi 0, %s22
      %p19 = scmp.ge.s32.totalorder %s18, 6
      %s28 = sphi 0, %s30
      %s31 = sphi 0, %s28
      %s32 = sphi 0, %s31
      %s48 = sphi 0, %s32
      %s54 = sphi 0, %s56
      %s57 = sphi 0, %s54
      %s58 = sphi 0, %s57
      %s74 = sphi 0, %s58
      %s78 = sphi 0, %s78
      %s80 = sphi 0, %s78
      %s81 = sphi 0, %s80
      %s95 = sphi 0, %s81
      %s101 = sphi 0, %s103
      %s104 = sphi 0, %s101
      %s105 = sphi 0, %s104
      %s121 = sphi 0, %s105
      %s125 = sphi 0, %s125
      %s127 = sphi 0, %s125
      %s128 = sphi 0, %s127
      %s142 = sphi 0, %s128
      %s146 = sphi 0, %s146
      %s148 = sphi 0, %s146
      %s149 = sphi 0, %s148
      %s163 = sphi 0, %s149
      %s169 = sphi 0, %s171
      %s172 = sphi 0, %s169
      %s173 = sphi 0, %s172
      %s189 = sphi 0, %s173
    $region4: #{tpu_custom_call.1} parent=1 // loop_header_branch
      %21 = sbr.rel (%p19) target = $region8
    $region5: #{tpu_custom_call.1} parent=1 // loop_body
      %s23 = ssub.s32 %s18, 1
      %s24 = ssub.s32 %s18, 2
      %s25 = sadd.s32 %s18, 1
      %s26 = ssub.s32 %s18, %s25
      %p27 = scmp.eq.s32.totalorder %s26, 0
      %s29 = sadd.s32 %s28, 1
      %s30 = scalar_select %p27, %s28, %s29
      %p33 = pneg %p27
      %p34 = scmp.eq.s32.totalorder %s18, 3
      %p35 = por %p33, %p34
      %p36 = scmp.ne.s32.totalorder %s28, %s31
      %p37 = scmp.eq.s32.totalorder %s18, 0
      %p38 = por %p36, %p37
      %p39 = scmp.ne.s32.totalorder %s28, %s31
      %p40 = scmp.eq.s32.totalorder %s23, 3
      %p41 = por %p39, %p40
      %p42 = scmp.ne.s32.totalorder %s31, %s32
      %p43 = scmp.eq.s32.totalorder %s23, 0
      %p44 = por %p42, %p43
      %p45 = scmp.ne.s32.totalorder %s31, %s32
      %p46 = scmp.eq.s32.totalorder %s24, 3
      %p47 = por %p45, %p46
      %p49 = scmp.ne.s32.totalorder %s32, %s48
      %p50 = scmp.eq.s32.totalorder %s24, 0
      %p51 = por %p49, %p50
      %s52 = ssub.s32 %s18, %s25
      %p53 = scmp.eq.s32.totalorder %s52, 0
      %s55 = sadd.s32 %s54, 1
      %s56 = scalar_select %p53, %s54, %s55
      %p59 = pneg %p53
      %p60 = scmp.eq.s32.totalorder %s18, 3
      %p61 = por %p59, %p60
      %p62 = scmp.ne.s32.totalorder %s54, %s57
      %p63 = scmp.eq.s32.totalorder %s18, 0
      %p64 = por %p62, %p63
      %p65 = scmp.ne.s32.totalorder %s54, %s57
      %p66 = scmp.eq.s32.totalorder %s23, 3
      %p67 = por %p65, %p66
      %p68 = scmp.ne.s32.totalorder %s57, %s58
      %p69 = scmp.eq.s32.totalorder %s23, 0
      %p70 = por %p68, %p69
      %p71 = scmp.ne.s32.totalorder %s57, %s58
      %p72 = scmp.eq.s32.totalorder %s24, 3
      %p73 = por %p71, %p72
      %p75 = scmp.ne.s32.totalorder %s58, %s74
      %p76 = scmp.eq.s32.totalorder %s24, 0
      %p77 = por %p75, %p76
      %s79 = sadd.s32 %s78, 1
      %p82 = scmp.eq.s32.totalorder %s18, 3
      %p83 = scmp.ne.s32.totalorder %s78, %s80
      %p84 = scmp.eq.s32.totalorder %s18, 0
      %p85 = por %p83, %p84
      %p86 = scmp.ne.s32.totalorder %s78, %s80
      %p87 = scmp.eq.s32.totalorder %s23, 3
      %p88 = por %p86, %p87
      %p89 = scmp.ne.s32.totalorder %s80, %s81
      %p90 = scmp.eq.s32.totalorder %s23, 0
      %p91 = por %p89, %p90
      %p92 = scmp.ne.s32.totalorder %s80, %s81
      %p93 = scmp.eq.s32.totalorder %s24, 3
      %p94 = por %p92, %p93
      %p96 = scmp.ne.s32.totalorder %s81, %s95
      %p97 = scmp.eq.s32.totalorder %s24, 0
      %p98 = por %p96, %p97
      %s99 = ssub.s32 %s18, %s25
      %p100 = scmp.eq.s32.totalorder %s99, 0
      %s102 = sadd.s32 %s101, 1
      %s103 = scalar_select %p100, %s101, %s102
      %p106 = pneg %p100
      %p107 = scmp.eq.s32.totalorder %s18, 3
      %p108 = por %p106, %p107
      %p109 = scmp.ne.s32.totalorder %s101, %s104
      %p110 = scmp.eq.s32.totalorder %s18, 0
      %p111 = por %p109, %p110
      %p112 = scmp.ne.s32.totalorder %s101, %s104
      %p113 = scmp.eq.s32.totalorder %s23, 3
      %p114 = por %p112, %p113
      %p115 = scmp.ne.s32.totalorder %s104, %s105
      %p116 = scmp.eq.s32.totalorder %s23, 0
      %p117 = por %p115, %p116
      %p118 = scmp.ne.s32.totalorder %s104, %s105
      %p119 = scmp.eq.s32.totalorder %s24, 3
      %p120 = por %p118, %p119
      %p122 = scmp.ne.s32.totalorder %s105, %s121
      %p123 = scmp.eq.s32.totalorder %s24, 0
      %p124 = por %p122, %p123
      %s126 = sadd.s32 %s125, 1
      %p129 = scmp.eq.s32.totalorder %s18, 3
      %p130 = scmp.ne.s32.totalorder %s125, %s127
      %p131 = scmp.eq.s32.totalorder %s18, 0
      %p132 = por %p130, %p131
      %p133 = scmp.ne.s32.totalorder %s125, %s127
      %p134 = scmp.eq.s32.totalorder %s23, 3
      %p135 = por %p133, %p134
      %p136 = scmp.ne.s32.totalorder %s127, %s128
      %p137 = scmp.eq.s32.totalorder %s23, 0
      %p138 = por %p136, %p137
      %p139 = scmp.ne.s32.totalorder %s127, %s128
      %p140 = scmp.eq.s32.totalorder %s24, 3
      %p141 = por %p139, %p140
      %p143 = scmp.ne.s32.totalorder %s128, %s142
      %p144 = scmp.eq.s32.totalorder %s24, 0
      %p145 = por %p143, %p144
      %s147 = sadd.s32 %s146, 1
      %p150 = scmp.eq.s32.totalorder %s18, 3
      %p151 = scmp.ne.s32.totalorder %s146, %s148
      %p152 = scmp.eq.s32.totalorder %s18, 0
      %p153 = por %p151, %p152
      %p154 = scmp.ne.s32.totalorder %s146, %s148
      %p155 = scmp.eq.s32.totalorder %s23, 3
      %p156 = por %p154, %p155
      %p157 = scmp.ne.s32.totalorder %s148, %s149
      %p158 = scmp.eq.s32.totalorder %s23, 0
      %p159 = por %p157, %p158
      %p160 = scmp.ne.s32.totalorder %s148, %s149
      %p161 = scmp.eq.s32.totalorder %s24, 3
      %p162 = por %p160, %p161
      %p164 = scmp.ne.s32.totalorder %s149, %s163
      %p165 = scmp.eq.s32.totalorder %s24, 0
      %p166 = por %p164, %p165
      %s167 = ssub.s32 %s18, %s25
      %p168 = scmp.eq.s32.totalorder %s167, 0
      %s170 = sadd.s32 %s169, 1
      %s171 = scalar_select %p168, %s169, %s170
      %p174 = pneg %p168
      %p175 = scmp.eq.s32.totalorder %s18, 3
      %p176 = por %p174, %p175
      %p177 = scmp.ne.s32.totalorder %s169, %s172
      %p178 = scmp.eq.s32.totalorder %s18, 0
      %p179 = por %p177, %p178
      %p180 = scmp.ne.s32.totalorder %s169, %s172
      %p181 = scmp.eq.s32.totalorder %s23, 3
      %p182 = por %p180, %p181
      %p183 = scmp.ne.s32.totalorder %s172, %s173
      %p184 = scmp.eq.s32.totalorder %s23, 0
      %p185 = por %p183, %p184
      %p186 = scmp.ne.s32.totalorder %s172, %s173
      %p187 = scmp.eq.s32.totalorder %s24, 3
      %p188 = por %p186, %p187
      %p190 = scmp.ne.s32.totalorder %s173, %s189
      %p191 = scmp.eq.s32.totalorder %s24, 0
      %p192 = por %p190, %p191
      %p193 = scmp.le.s32.totalorder 1, %s18
      %p194 = scmp.lt.s32.totalorder %s18, 5
      %p195 = pnand %p193, %p194
      %p196 = pneg %p195
      // Predicated region
      $region9: #{tpu_custom_call.1} parent=5 // pred_check
        _
      $region10: #{tpu_custom_call.1} parent=5 // pred_check_branch
        %198 = sbr.rel (%p195) target = $region12
      $region11: #{tpu_custom_call.1} parent=5 // pred_region
        %s199 = ssub.s32 %s18, 1
        // Predicated region
        $region13: #{tpu_custom_call.1} parent=11 // pred_check
          %p200 = pneg %p91
        $region14: #{tpu_custom_call.1} parent=11 // pred_check_branch
          %202 = sbr.rel (%p200) target = $region16
        $region15: #{tpu_custom_call.1} parent=11 // pred_region
          _
        $region16: #{tpu_custom_call.1} parent=11 // pred_fallthru
          _
        // Predicated region
        $region17: #{tpu_custom_call.1} parent=11 // pred_check
          %p203 = pneg %p138
        $region18: #{tpu_custom_call.1} parent=11 // pred_check_branch
          %205 = sbr.rel (%p203) target = $region20
        $region19: #{tpu_custom_call.1} parent=11 // pred_region
          _
        $region20: #{tpu_custom_call.1} parent=11 // pred_fallthru
          _
        // Predicated region
        $region21: #{tpu_custom_call.1} parent=11 // pred_check
          %p206 = pneg %p159
        $region22: #{tpu_custom_call.1} parent=11 // pred_check_branch
          %208 = sbr.rel (%p206) target = $region24
        $region23: #{tpu_custom_call.1} parent=11 // pred_region
          _
        $region24: #{tpu_custom_call.1} parent=11 // pred_fallthru
          _
      $region12: #{tpu_custom_call.1} parent=5 // pred_fallthru
        _
      %p209 = scmp.lt.s32.totalorder %s18, 4
      // Predicated region
      $region25: #{tpu_custom_call.1} parent=5 // pred_check
        %p210 = pneg %p209
      $region26: #{tpu_custom_call.1} parent=5 // pred_check_branch
        %212 = sbr.rel (%p210) target = $region28
      $region27: #{tpu_custom_call.1} parent=5 // pred_region
        // Predicated region
        $region29: #{tpu_custom_call.1} parent=27 // pred_check
          %p213 = pneg %p38
        $region30: #{tpu_custom_call.1} parent=27 // pred_check_branch
          %215 = sbr.rel (%p213) target = $region32
        $region31: #{tpu_custom_call.1} parent=27 // pred_region
          %s216 = sand.u32 %s28, 1
          %s217 = scalar_lea.sflag [#allocation4], %s216
          %s218 = sand.u32 %s28, 1
          %s219 = smul.addr %s218, 128
          %s220 = scalar_lea.vmem [#allocation3], %s219
          %s221 = smul.u32 4, %s18
          %s223 = ssub.s32 2048, 2048
          %224 = vsyncadd %s217, %s223
          %s225 = smul.addr %s221, 4
          %s226 = smul.addr %s225, 128
          %s227 = scalar_lea.hbm %s0, %s226
          %s228 = sshll.u32 %s220, 4
          %s229 = int_to_ptr.vmem [resolvable:$true] %s228
          %234 = dma.hbm_to_vmem [thread:$0]  %s227, 2048, %s229, %s217, 128, 128, 8
        $region32: #{tpu_custom_call.1} parent=27 // pred_fallthru
          _
        // Predicated region
        $region33: #{tpu_custom_call.1} parent=27 // pred_check
          %p235 = pneg %p64
        $region34: #{tpu_custom_call.1} parent=27 // pred_check_branch
          %237 = sbr.rel (%p235) target = $region36
        $region35: #{tpu_custom_call.1} parent=27 // pred_region
          %s238 = smul.u32 8, %s18
          %p239 = scmp.lt.s32.totalorder %s238, 31
          %s240 = scalar_select %p239, %s238, 31
          %s241 = smul.addr %s240, 8
          %s242 = scalar_lea.vmem %s1, %s241
          %s243 = smul.u32 8, %s18
        $region36: #{tpu_custom_call.1} parent=27 // pred_fallthru
          _
        // Predicated region
        $region37: #{tpu_custom_call.1} parent=27 // pred_check
          %p244 = pneg %p111
        $region38: #{tpu_custom_call.1} parent=27 // pred_check_branch
          %246 = sbr.rel (%p244) target = $region40
        $region39: #{tpu_custom_call.1} parent=27 // pred_region
          %s247 = smul.u32 4, %s18
          %p248 = scmp.lt.s32.totalorder %s247, 15
          %s249 = scalar_select %p248, %s247, 15
          %s250 = smul.addr %s249, 8
          %s251 = scalar_lea.vmem %s3, %s250
          %s252 = smul.u32 4, %s18
        $region40: #{tpu_custom_call.1} parent=27 // pred_fallthru
          _
      $region28: #{tpu_custom_call.1} parent=5 // pred_fallthru
        _
      %p253 = scmp.le.s32.totalorder 1, %s18
      %p254 = scmp.lt.s32.totalorder %s18, 5
      %p255 = pnand %p253, %p254
      %p256 = pneg %p255
      // Predicated region
      $region41: #{tpu_custom_call.1} parent=5 // pred_check
        _
      $region42: #{tpu_custom_call.1} parent=5 // pred_check_branch
        %258 = sbr.rel (%p255) target = $region44
      $region43: #{tpu_custom_call.1} parent=5 // pred_region
        %s259 = ssub.s32 %s18, 1
        %s260 = sand.u32 %s31, 1
        %s261 = scalar_lea.sflag [#allocation4], %s260
        %s262 = sand.u32 %s31, 1
        %s263 = smul.addr %s262, 128
        %s264 = scalar_lea.vmem [#allocation3], %s263
        // Predicated region
        $region45: #{tpu_custom_call.1} parent=43 // pred_check
          %p265 = pneg %p44
        $region46: #{tpu_custom_call.1} parent=43 // pred_check_branch
          %267 = sbr.rel (%p265) target = $region48
        $region47: #{tpu_custom_call.1} parent=43 // pred_region
          %268 = dma.done %s261, 2048
        $region48: #{tpu_custom_call.1} parent=43 // pred_fallthru
          _
        %s269 = sand.u32 %s31, 1
        %s270 = scalar_lea.sflag [#allocation4], %s269
        %s271 = sand.u32 %s31, 1
        %s272 = smul.addr %s271, 128
        %s273 = scalar_lea.vmem [#allocation3], %s272
        %p274 = pneg %p44
        %p275 = pneg %p41
        %s276 = smul.u32 8, %s23
        %p277 = scmp.lt.s32.totalorder %s276, 31
        %s278 = scalar_select %p277, %s276, 31
        %s279 = smul.addr %s278, 8
        %s280 = scalar_lea.vmem %s1, %s279
        %p281 = pneg %p70
        %p282 = pneg %p67
        %p283 = pneg %p91
        %p284 = pneg %p88
        %s285 = smul.u32 4, %s23
        %p286 = scmp.lt.s32.totalorder %s285, 15
        %s287 = scalar_select %p286, %s285, 15
        %s288 = smul.addr %s287, 8
        %s289 = scalar_lea.vmem %s3, %s288
        %p290 = pneg %p117
        %p291 = pneg %p114
        %p292 = pneg %p138
        %p293 = pneg %p135
        %p294 = pneg %p159
        %p295 = pneg %p156
        %p296 = pneg %p185
        %p297 = pneg %p182
        %s298 = sand.u32 %s172, 1
        %s299 = scalar_lea.sflag [#allocation5], %s298
        %s300 = sand.u32 %s172, 1
        %s301 = smul.addr %s300, 128
        %s302 = scalar_lea.vmem [#allocation6], %s301
        %s303 = smul.u32 4, %s23
        %s304 = smul.u32 8, %s23
        %p305 = scmp.lt.s32.totalorder %s304, 31
        %s306 = scalar_select %p305, %s304, 31
        %s307 = smul.addr %s306, 8
        %s308 = scalar_lea.vmem %s1, %s307
        %s309 = smul.u32 8, %s23
        %s310 = smul.u32 4, %s23
        %p311 = scmp.lt.s32.totalorder %s310, 15
        %s312 = scalar_select %p311, %s310, 15
        %s313 = smul.addr %s312, 8
        %s314 = scalar_lea.vmem %s3, %s313
        %s315 = smul.u32 4, %s23
        %s316 = smul.u32 4, %s23
        %v317 = vld [vmem:[%s308] sm:$0xff]
        %v318 = vld [vmem:[%s308 + $0x8] sm:$0xff]
        %v319 = vld [vmem:[%s308 + $0x10] sm:$0xff]
        %v320 = vld [vmem:[%s308 + $0x18] sm:$0xff]
        %v321 = vld [vmem:[%s308 + $0x20] sm:$0xff]
        %v322 = vld [vmem:[%s308 + $0x28] sm:$0xff]
        %v323 = vld [vmem:[%s308 + $0x30] sm:$0xff]
        %v324 = vld [vmem:[%s308 + $0x38] sm:$0xff]
        %v325 = vld [vmem:[%s2] sm:$0xff]
        %v326 = vld [vmem:[%s2 + $0x8] sm:$0xff]
        %vm327 = vcmask 130048
        %v329 = vsel %vm327, %v317, 0
        %v332 = vsel %vm327, %v318, 0
        %v335 = vsel %vm327, %v319, 0
        %v338 = vsel %vm327, %v320, 0
        %v341 = vsel %vm327, %v321, 0
        %v344 = vsel %vm327, %v322, 0
        %v347 = vsel %vm327, %v323, 0
        %v350 = vsel %vm327, %v324, 0
        %352 = vmatprep.subr.mxu0 0.0
        %353 = vmatpush1.msra.mxu0 0.0
        %354 = vmatprep.subr.mxu0 0.0
        %355 = vmatpush1.msra.mxu0 0.0
        %356 = vmatprep.subr.mxu0 0.0
        %357 = vmatpush1.msra.mxu0 0.0
        %358 = vmatprep.subr.mxu0 0.0
        %359 = vmatpush1.msra.mxu0 0.0
        %360 = vmatprep.subr.mxu0 0.0
        %361 = vmatpush1.msra.mxu0 0.0
        %362 = vmatprep.subr.mxu0 0.0
        %363 = vmatpush1.msra.mxu0 0.0
        %364 = vmatprep.subr.mxu0 0.0
        %365 = vmatpush1.msra.mxu0 0.0
        %366 = vmatprep.subr.mxu0 0.0
        %367 = vmatpush1.msra.mxu0 0.0
        %368 = vmatprep.subr.mxu0 0.0
        %369 = vmatpush1.msra.mxu0 0.0
        %370 = vmatprep.subr.mxu0 0.0
        %371 = vmatpush1.msra.mxu0 0.0
        %372 = vmatprep.subr.mxu0 0.0
        %373 = vmatpush1.msra.mxu0 0.0
        %374 = vmatprep.subr.mxu0 0.0
        %375 = vmatpush1.msra.mxu0 0.0
        %376 = vmatprep.subr.mxu0 0.0
        %377 = vmatpush1.msra.mxu0 0.0
        %378 = vmatprep.subr.mxu0 0.0
        %379 = vmatpush1.msra.mxu0 0.0
        %380 = vmatprep.subr.mxu0 0.0
        %381 = vmatpush1.msra.mxu0 %v326
        %382 = vmatprep.subr.mxu0 0.0
        %383 = vmatpush1.msra.mxu0 %v325
        %384 = vmatprep.subr.mxu0 0.0
        %385 = vmatpush2.msra.mxu0 0.0
        %386 = vmatprep.subr.mxu0 0.0
        %387 = vmatpush2.msra.mxu0 0.0
        %388 = vmatprep.subr.mxu0 0.0
        %389 = vmatpush2.msra.mxu0 0.0
        %390 = vmatprep.subr.mxu0 0.0
        %391 = vmatpush2.msra.mxu0 0.0
        %392 = vmatprep.subr.mxu0 0.0
        %393 = vmatpush2.msra.mxu0 0.0
        %394 = vmatprep.subr.mxu0 0.0
        %395 = vmatpush2.msra.mxu0 0.0
        %396 = vmatprep.subr.mxu0 0.0
        %397 = vmatpush2.msra.mxu0 0.0
        %398 = vmatprep.subr.mxu0 0.0
        %399 = vmatpush2.msra.mxu0 0.0
        %400 = vmatprep.subr.mxu0 0.0
        %401 = vmatpush2.msra.mxu0 0.0
        %402 = vmatprep.subr.mxu0 0.0
        %403 = vmatpush2.msra.mxu0 0.0
        %404 = vmatprep.subr.mxu0 0.0
        %405 = vmatpush2.msra.mxu0 0.0
        %406 = vmatprep.subr.mxu0 0.0
        %407 = vmatpush2.msra.mxu0 0.0
        %408 = vmatprep.subr.mxu0 0.0
        %409 = vmatpush2.msra.mxu0 0.0
        %410 = vmatprep.subr.mxu0 0.0
        %411 = vmatpush2.msra.mxu0 0.0
        %412 = vmatprep.subr.mxu0 0.0
        %413 = vmatpush2.msra.mxu0 0.0
        %414 = vmatprep.subr.mxu0 0.0
        %415 = vmatpush2.msra.mxu0 0.0
        %416 = vmatprep.mubr.f32.mxu0 0.0
        %417 = vmatmul.mubr.f32.gmra.mxu0 %v329
        %v418 = vpop.f32.mrf.mxu0
        %v419 = vadd.f32 0.0, %v418
        %v420 = vpop.f32.mrf.mxu0
        %421 = vmatprep.mubr.f32.mxu0 0.0
        %422 = vmatmul.mubr.f32.gmra.mxu0 %v332
        %v423 = vpop.f32.mrf.mxu0
        %v424 = vadd.f32 0.0, %v423
        %v425 = vpop.f32.mrf.mxu0
        %426 = vmatprep.mubr.f32.mxu0 0.0
        %427 = vmatmul.mubr.f32.gmra.mxu0 %v335
        %v428 = vpop.f32.mrf.mxu0
        %v429 = vadd.f32 0.0, %v428
        %v430 = vpop.f32.mrf.mxu0
        %431 = vmatprep.mubr.f32.mxu0 0.0
        %432 = vmatmul.mubr.f32.gmra.mxu0 %v338
        %v433 = vpop.f32.mrf.mxu0
        %v434 = vadd.f32 0.0, %v433
        %v435 = vpop.f32.mrf.mxu0
        %436 = vmatprep.mubr.f32.mxu0 0.0
        %437 = vmatmul.mubr.f32.gmra.mxu0 %v341
        %v438 = vpop.f32.mrf.mxu0
        %v439 = vadd.f32 0.0, %v438
        %v440 = vpop.f32.mrf.mxu0
        %441 = vmatprep.mubr.f32.mxu0 0.0
        %442 = vmatmul.mubr.f32.gmra.mxu0 %v344
        %v443 = vpop.f32.mrf.mxu0
        %v444 = vadd.f32 0.0, %v443
        %v445 = vpop.f32.mrf.mxu0
        %446 = vmatprep.mubr.f32.mxu0 0.0
        %447 = vmatmul.mubr.f32.gmra.mxu0 %v347
        %v448 = vpop.f32.mrf.mxu0
        %v449 = vadd.f32 0.0, %v448
        %v450 = vpop.f32.mrf.mxu0
        %451 = vmatprep.mubr.f32.mxu0 0.0
        %452 = vmatmul.mubr.f32.gmra.mxu0 %v350
        %v453 = vpop.f32.mrf.mxu0
        %v454 = vadd.f32 0.0, %v453
        %v455 = vpop.f32.mrf.mxu0
        %456 = vdwg.mxu0
        %vm457 = vcmask 261120
        %458 = vst.msk [vmem:[#allocation2] sm:$0xff] %vm457, %v419
        %459 = vst.msk [vmem:[#allocation2 + $0x8] sm:$0xff] %vm457, %v424
        %460 = vst.msk [vmem:[#allocation2 + $0x18] sm:$0xff] %vm457, %v429
        %461 = vst.msk [vmem:[#allocation2 + $0x20] sm:$0xff] %vm457, %v434
        %462 = vst.msk [vmem:[#allocation2 + $0x30] sm:$0xff] %vm457, %v439
        %463 = vst.msk [vmem:[#allocation2 + $0x38] sm:$0xff] %vm457, %v444
        %464 = vst.msk [vmem:[#allocation2 + $0x48] sm:$0xff] %vm457, %v449
        %465 = vst.msk [vmem:[#allocation2 + $0x50] sm:$0xff] %vm457, %v454
        %v466 = vld [vmem:[%s314] sm:$0xff]
        %v467 = vld [vmem:[%s314 + $0x8] sm:$0xff]
        %v468 = vld [vmem:[%s314 + $0x10] sm:$0xff]
        %v469 = vld [vmem:[%s314 + $0x18] sm:$0xff]
        %v470 = vld [vmem:[%s4] sm:$0xff]
        %vm471 = vcmask 64512
        %v473 = vsel %vm471, %v466, 0
        %v476 = vsel %vm471, %v467, 0
        %v479 = vsel %vm471, %v468, 0
        %v482 = vsel %vm471, %v469, 0
        %484 = vmatprep.subr.mxu0 0.0
        %485 = vmatpush1.msra.mxu0 0.0
        %486 = vmatprep.subr.mxu0 0.0
        %487 = vmatpush1.msra.mxu0 0.0
        %488 = vmatprep.subr.mxu0 0.0
        %489 = vmatpush1.msra.mxu0 0.0
        %490 = vmatprep.subr.mxu0 0.0
        %491 = vmatpush1.msra.mxu0 0.0
        %492 = vmatprep.subr.mxu0 0.0
        %493 = vmatpush1.msra.mxu0 0.0
        %494 = vmatprep.subr.mxu0 0.0
        %495 = vmatpush1.msra.mxu0 0.0
        %496 = vmatprep.subr.mxu0 0.0
        %497 = vmatpush1.msra.mxu0 0.0
        %498 = vmatprep.subr.mxu0 0.0
        %499 = vmatpush1.msra.mxu0 0.0
        %500 = vmatprep.subr.mxu0 0.0
        %501 = vmatpush1.msra.mxu0 0.0
        %502 = vmatprep.subr.mxu0 0.0
        %503 = vmatpush1.msra.mxu0 0.0
        %504 = vmatprep.subr.mxu0 0.0
        %505 = vmatpush1.msra.mxu0 0.0
        %506 = vmatprep.subr.mxu0 0.0
        %507 = vmatpush1.msra.mxu0 0.0
        %508 = vmatprep.subr.mxu0 0.0
        %509 = vmatpush1.msra.mxu0 0.0
        %510 = vmatprep.subr.mxu0 0.0
        %511 = vmatpush1.msra.mxu0 0.0
        %512 = vmatprep.subr.mxu0 0.0
        %513 = vmatpush1.msra.mxu0 0.0
        %514 = vmatprep.subr.mxu0 0.0
        %515 = vmatpush1.msra.mxu0 %v470
        %516 = vmatprep.subr.mxu0 0.0
        %517 = vmatpush2.msra.mxu0 0.0
        %518 = vmatprep.subr.mxu0 0.0
        %519 = vmatpush2.msra.mxu0 0.0
        %520 = vmatprep.subr.mxu0 0.0
        %521 = vmatpush2.msra.mxu0 0.0
        %522 = vmatprep.subr.mxu0 0.0
        %523 = vmatpush2.msra.mxu0 0.0
        %524 = vmatprep.subr.mxu0 0.0
        %525 = vmatpush2.msra.mxu0 0.0
        %526 = vmatprep.subr.mxu0 0.0
        %527 = vmatpush2.msra.mxu0 0.0
        %528 = vmatprep.subr.mxu0 0.0
        %529 = vmatpush2.msra.mxu0 0.0
        %530 = vmatprep.subr.mxu0 0.0
        %531 = vmatpush2.msra.mxu0 0.0
        %532 = vmatprep.subr.mxu0 0.0
        %533 = vmatpush2.msra.mxu0 0.0
        %534 = vmatprep.subr.mxu0 0.0
        %535 = vmatpush2.msra.mxu0 0.0
        %536 = vmatprep.subr.mxu0 0.0
        %537 = vmatpush2.msra.mxu0 0.0
        %538 = vmatprep.subr.mxu0 0.0
        %539 = vmatpush2.msra.mxu0 0.0
        %540 = vmatprep.subr.mxu0 0.0
        %541 = vmatpush2.msra.mxu0 0.0
        %542 = vmatprep.subr.mxu0 0.0
        %543 = vmatpush2.msra.mxu0 0.0
        %544 = vmatprep.subr.mxu0 0.0
        %545 = vmatpush2.msra.mxu0 0.0
        %546 = vmatprep.subr.mxu0 0.0
        %547 = vmatpush2.msra.mxu0 0.0
        %548 = vmatprep.mubr.f32.mxu0 0.0
        %549 = vmatmul.mubr.f32.gmra.mxu0 %v473
        %v550 = vpop.f32.mrf.mxu0
        %v551 = vadd.f32 0.0, %v550
        %v552 = vpop.f32.mrf.mxu0
        %553 = vmatprep.mubr.f32.mxu0 0.0
        %554 = vmatmul.mubr.f32.gmra.mxu0 %v476
        %v555 = vpop.f32.mrf.mxu0
        %v556 = vadd.f32 0.0, %v555
        %v557 = vpop.f32.mrf.mxu0
        %558 = vmatprep.mubr.f32.mxu0 0.0
        %559 = vmatmul.mubr.f32.gmra.mxu0 %v479
        %v560 = vpop.f32.mrf.mxu0
        %v561 = vadd.f32 0.0, %v560
        %v562 = vpop.f32.mrf.mxu0
        %563 = vmatprep.mubr.f32.mxu0 0.0
        %564 = vmatmul.mubr.f32.gmra.mxu0 %v482
        %v565 = vpop.f32.mrf.mxu0
        %v566 = vadd.f32 0.0, %v565
        %v567 = vpop.f32.mrf.mxu0
        %568 = vdwg.mxu0
        %569 = vst.msk [vmem:[#allocation2 + $0x10] sm:$0xff] %vm457, %v551
        %570 = vst.msk [vmem:[#allocation2 + $0x28] sm:$0xff] %vm457, %v556
        %571 = vst.msk [vmem:[#allocation2 + $0x40] sm:$0xff] %vm457, %v561
        %572 = vst.msk [vmem:[#allocation2 + $0x58] sm:$0xff] %vm457, %v566
        %v573 = vld [vmem:[%s5] sm:$0xff]
        %v574 = vld [vmem:[%s5 + $0x8] sm:$0xff]
        %v575 = vld [vmem:[%s5 + $0x10] sm:$0xff]
        %v576 = vld [vmem:[%s5 + $0x18] sm:$0xff]
        %v577 = vld [vmem:[#allocation2] sm:$0xff]
        %v578 = vld [vmem:[#allocation2 + $0x8] sm:$0xff]
        %v579 = vld [vmem:[#allocation2 + $0x10] sm:$0xff]
        %vm580 = vcmask 195584
        %v582 = vsel %vm580, %v573, 0
        %v585 = vsel %vm580, %v574, 0
        %v588 = vsel %vm580, %v575, 0
        %v591 = vsel %vm580, %v576, 0
        %593 = vmatprep.subr.mxu0 0.0
        %594 = vmatpush1.msra.mxu0 0.0
        %595 = vmatprep.subr.mxu0 0.0
        %596 = vmatpush1.msra.mxu0 0.0
        %597 = vmatprep.subr.mxu0 0.0
        %598 = vmatpush1.msra.mxu0 0.0
        %599 = vmatprep.subr.mxu0 0.0
        %600 = vmatpush1.msra.mxu0 0.0
        %601 = vmatprep.subr.mxu0 0.0
        %602 = vmatpush1.msra.mxu0 0.0
        %603 = vmatprep.subr.mxu0 0.0
        %604 = vmatpush1.msra.mxu0 0.0
        %605 = vmatprep.subr.mxu0 0.0
        %606 = vmatpush1.msra.mxu0 0.0
        %607 = vmatprep.subr.mxu0 0.0
        %608 = vmatpush1.msra.mxu0 0.0
        %609 = vmatprep.subr.mxu0 0.0
        %610 = vmatpush1.msra.mxu0 0.0
        %611 = vmatprep.subr.mxu0 0.0
        %612 = vmatpush1.msra.mxu0 0.0
        %613 = vmatprep.subr.mxu0 0.0
        %614 = vmatpush1.msra.mxu0 0.0
        %615 = vmatprep.subr.mxu0 0.0
        %616 = vmatpush1.msra.mxu0 0.0
        %617 = vmatprep.subr.mxu0 0.0
        %618 = vmatpush1.msra.mxu0 0.0
        %619 = vmatprep.subr.mxu0 0.0
        %620 = vmatpush1.msra.mxu0 %v579
        %621 = vmatprep.subr.mxu0 0.0
        %622 = vmatpush1.msra.mxu0 %v578
        %623 = vmatprep.subr.mxu0 0.0
        %624 = vmatpush1.msra.mxu0 %v577
        %625 = vmatprep.subr.mxu0 0.0
        %626 = vmatpush2.msra.mxu0 0.0
        %627 = vmatprep.subr.mxu0 0.0
        %628 = vmatpush2.msra.mxu0 0.0
        %629 = vmatprep.subr.mxu0 0.0
        %630 = vmatpush2.msra.mxu0 0.0
        %631 = vmatprep.subr.mxu0 0.0
        %632 = vmatpush2.msra.mxu0 0.0
        %633 = vmatprep.subr.mxu0 0.0
        %634 = vmatpush2.msra.mxu0 0.0
        %635 = vmatprep.subr.mxu0 0.0
        %636 = vmatpush2.msra.mxu0 0.0
        %637 = vmatprep.subr.mxu0 0.0
        %638 = vmatpush2.msra.mxu0 0.0
        %639 = vmatprep.subr.mxu0 0.0
        %640 = vmatpush2.msra.mxu0 0.0
        %641 = vmatprep.subr.mxu0 0.0
        %642 = vmatpush2.msra.mxu0 0.0
        %643 = vmatprep.subr.mxu0 0.0
        %644 = vmatpush2.msra.mxu0 0.0
        %645 = vmatprep.subr.mxu0 0.0
        %646 = vmatpush2.msra.mxu0 0.0
        %647 = vmatprep.subr.mxu0 0.0
        %648 = vmatpush2.msra.mxu0 0.0
        %649 = vmatprep.subr.mxu0 0.0
        %650 = vmatpush2.msra.mxu0 0.0
        %651 = vmatprep.subr.mxu0 0.0
        %652 = vmatpush2.msra.mxu0 0.0
        %653 = vmatprep.subr.mxu0 0.0
        %654 = vmatpush2.msra.mxu0 0.0
        %655 = vmatprep.subr.mxu0 0.0
        %656 = vmatpush2.msra.mxu0 0.0
        %657 = vmatprep.mubr.f32.mxu0 0.0
        %658 = vmatmul.mubr.f32.gmra.mxu0 %v582
        %v659 = vpop.f32.mrf.mxu0
        %v660 = vadd.f32 0.0, %v659
        %v661 = vpop.f32.mrf.mxu0
        %662 = vmatprep.mubr.f32.mxu0 0.0
        %663 = vmatmul.mubr.f32.gmra.mxu0 %v585
        %v664 = vpop.f32.mrf.mxu0
        %v665 = vadd.f32 0.0, %v664
        %v666 = vpop.f32.mrf.mxu0
        %667 = vmatprep.mubr.f32.mxu0 0.0
        %668 = vmatmul.mubr.f32.gmra.mxu0 %v588
        %v669 = vpop.f32.mrf.mxu0
        %v670 = vadd.f32 0.0, %v669
        %v671 = vpop.f32.mrf.mxu0
        %672 = vmatprep.mubr.f32.mxu0 0.0
        %673 = vmatmul.mubr.f32.gmra.mxu0 %v591
        %v674 = vpop.f32.mrf.mxu0
        %v675 = vadd.f32 0.0, %v674
        %v676 = vpop.f32.mrf.mxu0
        %677 = vdwg.mxu0
        %v678 = vld [vmem:[%s264] sm:$0xff]
        %v679 = vld [vmem:[%s264 + $0x8] sm:$0xff]
        %v680 = vld [vmem:[%s264 + $0x10] sm:$0xff]
        %v681 = vld [vmem:[%s264 + $0x18] sm:$0xff]
        %v682 = vadd.f32 %v678, %v660
        %v683 = vadd.f32 %v679, %v665
        %v684 = vadd.f32 %v680, %v670
        %v685 = vadd.f32 %v681, %v675
        %686 = vst.msk [vmem:[%s302] sm:$0xff] %vm457, %v682
        %687 = vst.msk [vmem:[%s302 + $0x8] sm:$0xff] %vm457, %v683
        %688 = vst.msk [vmem:[%s302 + $0x10] sm:$0xff] %vm457, %v684
        %689 = vst.msk [vmem:[%s302 + $0x18] sm:$0xff] %vm457, %v685
        %s690 = scalar_lea.vmem [#allocation2], 24
        %v691 = vld [vmem:[%s690] sm:$0xff]
        %v692 = vld [vmem:[%s690 + $0x8] sm:$0xff]
        %v693 = vld [vmem:[%s690 + $0x10] sm:$0xff]
        %694 = vmatprep.subr.mxu0 0.0
        %695 = vmatpush1.msra.mxu0 0.0
        %696 = vmatprep.subr.mxu0 0.0
        %697 = vmatpush1.msra.mxu0 0.0
        %698 = vmatprep.subr.mxu0 0.0
        %699 = vmatpush1.msra.mxu0 0.0
        %700 = vmatprep.subr.mxu0 0.0
        %701 = vmatpush1.msra.mxu0 0.0
        %702 = vmatprep.subr.mxu0 0.0
        %703 = vmatpush1.msra.mxu0 0.0
        %704 = vmatprep.subr.mxu0 0.0
        %705 = vmatpush1.msra.mxu0 0.0
        %706 = vmatprep.subr.mxu0 0.0
        %707 = vmatpush1.msra.mxu0 0.0
        %708 = vmatprep.subr.mxu0 0.0
        %709 = vmatpush1.msra.mxu0 0.0
        %710 = vmatprep.subr.mxu0 0.0
        %711 = vmatpush1.msra.mxu0 0.0
        %712 = vmatprep.subr.mxu0 0.0
        %713 = vmatpush1.msra.mxu0 0.0
        %714 = vmatprep.subr.mxu0 0.0
        %715 = vmatpush1.msra.mxu0 0.0
        %716 = vmatprep.subr.mxu0 0.0
        %717 = vmatpush1.msra.mxu0 0.0
        %718 = vmatprep.subr.mxu0 0.0
        %719 = vmatpush1.msra.mxu0 0.0
        %720 = vmatprep.subr.mxu0 0.0
        %721 = vmatpush1.msra.mxu0 %v693
        %722 = vmatprep.subr.mxu0 0.0
        %723 = vmatpush1.msra.mxu0 %v692
        %724 = vmatprep.subr.mxu0 0.0
        %725 = vmatpush1.msra.mxu0 %v691
        %726 = vmatprep.subr.mxu0 0.0
        %727 = vmatpush2.msra.mxu0 0.0
        %728 = vmatprep.subr.mxu0 0.0
        %729 = vmatpush2.msra.mxu0 0.0
        %730 = vmatprep.subr.mxu0 0.0
        %731 = vmatpush2.msra.mxu0 0.0
        %732 = vmatprep.subr.mxu0 0.0
        %733 = vmatpush2.msra.mxu0 0.0
        %734 = vmatprep.subr.mxu0 0.0
        %735 = vmatpush2.msra.mxu0 0.0
        %736 = vmatprep.subr.mxu0 0.0
        %737 = vmatpush2.msra.mxu0 0.0
        %738 = vmatprep.subr.mxu0 0.0
        %739 = vmatpush2.msra.mxu0 0.0
        %740 = vmatprep.subr.mxu0 0.0
        %741 = vmatpush2.msra.mxu0 0.0
        %742 = vmatprep.subr.mxu0 0.0
        %743 = vmatpush2.msra.mxu0 0.0
        %744 = vmatprep.subr.mxu0 0.0
        %745 = vmatpush2.msra.mxu0 0.0
        %746 = vmatprep.subr.mxu0 0.0
        %747 = vmatpush2.msra.mxu0 0.0
        %748 = vmatprep.subr.mxu0 0.0
        %749 = vmatpush2.msra.mxu0 0.0
        %750 = vmatprep.subr.mxu0 0.0
        %751 = vmatpush2.msra.mxu0 0.0
        %752 = vmatprep.subr.mxu0 0.0
        %753 = vmatpush2.msra.mxu0 0.0
        %754 = vmatprep.subr.mxu0 0.0
        %755 = vmatpush2.msra.mxu0 0.0
        %756 = vmatprep.subr.mxu0 0.0
        %757 = vmatpush2.msra.mxu0 0.0
        %758 = vmatprep.mubr.f32.mxu0 0.0
        %759 = vmatmul.mubr.f32.gmra.mxu0 %v582
        %v760 = vpop.f32.mrf.mxu0
        %v761 = vadd.f32 0.0, %v760
        %v762 = vpop.f32.mrf.mxu0
        %763 = vmatprep.mubr.f32.mxu0 0.0
        %764 = vmatmul.mubr.f32.gmra.mxu0 %v585
        %v765 = vpop.f32.mrf.mxu0
        %v766 = vadd.f32 0.0, %v765
        %v767 = vpop.f32.mrf.mxu0
        %768 = vmatprep.mubr.f32.mxu0 0.0
        %769 = vmatmul.mubr.f32.gmra.mxu0 %v588
        %v770 = vpop.f32.mrf.mxu0
        %v771 = vadd.f32 0.0, %v770
        %v772 = vpop.f32.mrf.mxu0
        %773 = vmatprep.mubr.f32.mxu0 0.0
        %774 = vmatmul.mubr.f32.gmra.mxu0 %v591
        %v775 = vpop.f32.mrf.mxu0
        %v776 = vadd.f32 0.0, %v775
        %v777 = vpop.f32.mrf.mxu0
        %778 = vdwg.mxu0
        %s779 = scalar_lea.vmem %s264, 32 [#allocation3]
        %v780 = vld [vmem:[%s779] sm:$0xff]
        %v781 = vld [vmem:[%s779 + $0x8] sm:$0xff]
        %v782 = vld [vmem:[%s779 + $0x10] sm:$0xff]
        %v783 = vld [vmem:[%s779 + $0x18] sm:$0xff]
        %v784 = vadd.f32 %v780, %v761
        %v785 = vadd.f32 %v781, %v766
        %v786 = vadd.f32 %v782, %v771
        %v787 = vadd.f32 %v783, %v776
        %s788 = scalar_lea.vmem %s302, 32 [#allocation6]
        %789 = vst.msk [vmem:[%s788] sm:$0xff] %vm457, %v784
        %790 = vst.msk [vmem:[%s788 + $0x8] sm:$0xff] %vm457, %v785
        %791 = vst.msk [vmem:[%s788 + $0x10] sm:$0xff] %vm457, %v786
        %792 = vst.msk [vmem:[%s788 + $0x18] sm:$0xff] %vm457, %v787
        %s793 = scalar_lea.vmem [#allocation2], 48
        %v794 = vld [vmem:[%s793] sm:$0xff]
        %v795 = vld [vmem:[%s793 + $0x8] sm:$0xff]
        %v796 = vld [vmem:[%s793 + $0x10] sm:$0xff]
        %797 = vmatprep.subr.mxu0 0.0
        %798 = vmatpush1.msra.mxu0 0.0
        %799 = vmatprep.subr.mxu0 0.0
        %800 = vmatpush1.msra.mxu0 0.0
        %801 = vmatprep.subr.mxu0 0.0
        %802 = vmatpush1.msra.mxu0 0.0
        %803 = vmatprep.subr.mxu0 0.0
        %804 = vmatpush1.msra.mxu0 0.0
        %805 = vmatprep.subr.mxu0 0.0
        %806 = vmatpush1.msra.mxu0 0.0
        %807 = vmatprep.subr.mxu0 0.0
        %808 = vmatpush1.msra.mxu0 0.0
        %809 = vmatprep.subr.mxu0 0.0
        %810 = vmatpush1.msra.mxu0 0.0
        %811 = vmatprep.subr.mxu0 0.0
        %812 = vmatpush1.msra.mxu0 0.0
        %813 = vmatprep.subr.mxu0 0.0
        %814 = vmatpush1.msra.mxu0 0.0
        %815 = vmatprep.subr.mxu0 0.0
        %816 = vmatpush1.msra.mxu0 0.0
        %817 = vmatprep.subr.mxu0 0.0
        %818 = vmatpush1.msra.mxu0 0.0
        %819 = vmatprep.subr.mxu0 0.0
        %820 = vmatpush1.msra.mxu0 0.0
        %821 = vmatprep.subr.mxu0 0.0
        %822 = vmatpush1.msra.mxu0 0.0
        %823 = vmatprep.subr.mxu0 0.0
        %824 = vmatpush1.msra.mxu0 %v796
        %825 = vmatprep.subr.mxu0 0.0
        %826 = vmatpush1.msra.mxu0 %v795
        %827 = vmatprep.subr.mxu0 0.0
        %828 = vmatpush1.msra.mxu0 %v794
        %829 = vmatprep.subr.mxu0 0.0
        %830 = vmatpush2.msra.mxu0 0.0
        %831 = vmatprep.subr.mxu0 0.0
        %832 = vmatpush2.msra.mxu0 0.0
        %833 = vmatprep.subr.mxu0 0.0
        %834 = vmatpush2.msra.mxu0 0.0
        %835 = vmatprep.subr.mxu0 0.0
        %836 = vmatpush2.msra.mxu0 0.0
        %837 = vmatprep.subr.mxu0 0.0
        %838 = vmatpush2.msra.mxu0 0.0
        %839 = vmatprep.subr.mxu0 0.0
        %840 = vmatpush2.msra.mxu0 0.0
        %841 = vmatprep.subr.mxu0 0.0
        %842 = vmatpush2.msra.mxu0 0.0
        %843 = vmatprep.subr.mxu0 0.0
        %844 = vmatpush2.msra.mxu0 0.0
        %845 = vmatprep.subr.mxu0 0.0
        %846 = vmatpush2.msra.mxu0 0.0
        %847 = vmatprep.subr.mxu0 0.0
        %848 = vmatpush2.msra.mxu0 0.0
        %849 = vmatprep.subr.mxu0 0.0
        %850 = vmatpush2.msra.mxu0 0.0
        %851 = vmatprep.subr.mxu0 0.0
        %852 = vmatpush2.msra.mxu0 0.0
        %853 = vmatprep.subr.mxu0 0.0
        %854 = vmatpush2.msra.mxu0 0.0
        %855 = vmatprep.subr.mxu0 0.0
        %856 = vmatpush2.msra.mxu0 0.0
        %857 = vmatprep.subr.mxu0 0.0
        %858 = vmatpush2.msra.mxu0 0.0
        %859 = vmatprep.subr.mxu0 0.0
        %860 = vmatpush2.msra.mxu0 0.0
        %861 = vmatprep.mubr.f32.mxu0 0.0
        %862 = vmatmul.mubr.f32.gmra.mxu0 %v582
        %v863 = vpop.f32.mrf.mxu0
        %v864 = vadd.f32 0.0, %v863
        %v865 = vpop.f32.mrf.mxu0
        %866 = vmatprep.mubr.f32.mxu0 0.0
        %867 = vmatmul.mubr.f32.gmra.mxu0 %v585
        %v868 = vpop.f32.mrf.mxu0
        %v869 = vadd.f32 0.0, %v868
        %v870 = vpop.f32.mrf.mxu0
        %871 = vmatprep.mubr.f32.mxu0 0.0
        %872 = vmatmul.mubr.f32.gmra.mxu0 %v588
        %v873 = vpop.f32.mrf.mxu0
        %v874 = vadd.f32 0.0, %v873
        %v875 = vpop.f32.mrf.mxu0
        %876 = vmatprep.mubr.f32.mxu0 0.0
        %877 = vmatmul.mubr.f32.gmra.mxu0 %v591
        %v878 = vpop.f32.mrf.mxu0
        %v879 = vadd.f32 0.0, %v878
        %v880 = vpop.f32.mrf.mxu0
        %881 = vdwg.mxu0
        %s882 = scalar_lea.vmem %s264, 64 [#allocation3]
        %v883 = vld [vmem:[%s882] sm:$0xff]
        %v884 = vld [vmem:[%s882 + $0x8] sm:$0xff]
        %v885 = vld [vmem:[%s882 + $0x10] sm:$0xff]
        %v886 = vld [vmem:[%s882 + $0x18] sm:$0xff]
        %v887 = vadd.f32 %v883, %v864
        %v888 = vadd.f32 %v884, %v869
        %v889 = vadd.f32 %v885, %v874
        %v890 = vadd.f32 %v886, %v879
        %s891 = scalar_lea.vmem %s302, 64 [#allocation6]
        %892 = vst.msk [vmem:[%s891] sm:$0xff] %vm457, %v887
        %893 = vst.msk [vmem:[%s891 + $0x8] sm:$0xff] %vm457, %v888
        %894 = vst.msk [vmem:[%s891 + $0x10] sm:$0xff] %vm457, %v889
        %895 = vst.msk [vmem:[%s891 + $0x18] sm:$0xff] %vm457, %v890
        %s896 = scalar_lea.vmem [#allocation2], 72
        %v897 = vld [vmem:[%s896] sm:$0xff]
        %v898 = vld [vmem:[%s896 + $0x8] sm:$0xff]
        %v899 = vld [vmem:[%s896 + $0x10] sm:$0xff]
        %900 = vmatprep.subr.mxu0 0.0
        %901 = vmatpush1.msra.mxu0 0.0
        %902 = vmatprep.subr.mxu0 0.0
        %903 = vmatpush1.msra.mxu0 0.0
        %904 = vmatprep.subr.mxu0 0.0
        %905 = vmatpush1.msra.mxu0 0.0
        %906 = vmatprep.subr.mxu0 0.0
        %907 = vmatpush1.msra.mxu0 0.0
        %908 = vmatprep.subr.mxu0 0.0
        %909 = vmatpush1.msra.mxu0 0.0
        %910 = vmatprep.subr.mxu0 0.0
        %911 = vmatpush1.msra.mxu0 0.0
        %912 = vmatprep.subr.mxu0 0.0
        %913 = vmatpush1.msra.mxu0 0.0
        %914 = vmatprep.subr.mxu0 0.0
        %915 = vmatpush1.msra.mxu0 0.0
        %916 = vmatprep.subr.mxu0 0.0
        %917 = vmatpush1.msra.mxu0 0.0
        %918 = vmatprep.subr.mxu0 0.0
        %919 = vmatpush1.msra.mxu0 0.0
        %920 = vmatprep.subr.mxu0 0.0
        %921 = vmatpush1.msra.mxu0 0.0
        %922 = vmatprep.subr.mxu0 0.0
        %923 = vmatpush1.msra.mxu0 0.0
        %924 = vmatprep.subr.mxu0 0.0
        %925 = vmatpush1.msra.mxu0 0.0
        %926 = vmatprep.subr.mxu0 0.0
        %927 = vmatpush1.msra.mxu0 %v899
        %928 = vmatprep.subr.mxu0 0.0
        %929 = vmatpush1.msra.mxu0 %v898
        %930 = vmatprep.subr.mxu0 0.0
        %931 = vmatpush1.msra.mxu0 %v897
        %932 = vmatprep.subr.mxu0 0.0
        %933 = vmatpush2.msra.mxu0 0.0
        %934 = vmatprep.subr.mxu0 0.0
        %935 = vmatpush2.msra.mxu0 0.0
        %936 = vmatprep.subr.mxu0 0.0
        %937 = vmatpush2.msra.mxu0 0.0
        %938 = vmatprep.subr.mxu0 0.0
        %939 = vmatpush2.msra.mxu0 0.0
        %940 = vmatprep.subr.mxu0 0.0
        %941 = vmatpush2.msra.mxu0 0.0
        %942 = vmatprep.subr.mxu0 0.0
        %943 = vmatpush2.msra.mxu0 0.0
        %944 = vmatprep.subr.mxu0 0.0
        %945 = vmatpush2.msra.mxu0 0.0
        %946 = vmatprep.subr.mxu0 0.0
        %947 = vmatpush2.msra.mxu0 0.0
        %948 = vmatprep.subr.mxu0 0.0
        %949 = vmatpush2.msra.mxu0 0.0
        %950 = vmatprep.subr.mxu0 0.0
        %951 = vmatpush2.msra.mxu0 0.0
        %952 = vmatprep.subr.mxu0 0.0
        %953 = vmatpush2.msra.mxu0 0.0
        %954 = vmatprep.subr.mxu0 0.0
        %955 = vmatpush2.msra.mxu0 0.0
        %956 = vmatprep.subr.mxu0 0.0
        %957 = vmatpush2.msra.mxu0 0.0
        %958 = vmatprep.subr.mxu0 0.0
        %959 = vmatpush2.msra.mxu0 0.0
        %960 = vmatprep.subr.mxu0 0.0
        %961 = vmatpush2.msra.mxu0 0.0
        %962 = vmatprep.subr.mxu0 0.0
        %963 = vmatpush2.msra.mxu0 0.0
        %964 = vmatprep.mubr.f32.mxu0 0.0
        %965 = vmatmul.mubr.f32.gmra.mxu0 %v582
        %v966 = vpop.f32.mrf.mxu0
        %v967 = vadd.f32 0.0, %v966
        %v968 = vpop.f32.mrf.mxu0
        %969 = vmatprep.mubr.f32.mxu0 0.0
        %970 = vmatmul.mubr.f32.gmra.mxu0 %v585
        %v971 = vpop.f32.mrf.mxu0
        %v972 = vadd.f32 0.0, %v971
        %v973 = vpop.f32.mrf.mxu0
        %974 = vmatprep.mubr.f32.mxu0 0.0
        %975 = vmatmul.mubr.f32.gmra.mxu0 %v588
        %v976 = vpop.f32.mrf.mxu0
        %v977 = vadd.f32 0.0, %v976
        %v978 = vpop.f32.mrf.mxu0
        %979 = vmatprep.mubr.f32.mxu0 0.0
        %980 = vmatmul.mubr.f32.gmra.mxu0 %v591
        %v981 = vpop.f32.mrf.mxu0
        %v982 = vadd.f32 0.0, %v981
        %v983 = vpop.f32.mrf.mxu0
        %984 = vdwg.mxu0
        %s985 = scalar_lea.vmem %s264, 96 [#allocation3]
        %v986 = vld [vmem:[%s985] sm:$0xff]
        %v987 = vld [vmem:[%s985 + $0x8] sm:$0xff]
        %v988 = vld [vmem:[%s985 + $0x10] sm:$0xff]
        %v989 = vld [vmem:[%s985 + $0x18] sm:$0xff]
        %v990 = vadd.f32 %v986, %v967
        %v991 = vadd.f32 %v987, %v972
        %v992 = vadd.f32 %v988, %v977
        %v993 = vadd.f32 %v989, %v982
        %s994 = scalar_lea.vmem %s302, 96 [#allocation6]
        %995 = vst.msk [vmem:[%s994] sm:$0xff] %vm457, %v990
        %996 = vst.msk [vmem:[%s994 + $0x8] sm:$0xff] %vm457, %v991
        %997 = vst.msk [vmem:[%s994 + $0x10] sm:$0xff] %vm457, %v992
        %998 = vst.msk [vmem:[%s994 + $0x18] sm:$0xff] %vm457, %v993
        %s999 = sand.u32 %s172, 1
        %s1000 = scalar_lea.sflag [#allocation5], %s999
        %s1001 = sand.u32 %s172, 1
        %s1002 = smul.addr %s1001, 128
        %s1003 = scalar_lea.vmem [#allocation6], %s1002
        // Predicated region
        $region49: #{tpu_custom_call.1} parent=43 // pred_check
          %p1004 = pneg %p182
        $region50: #{tpu_custom_call.1} parent=43 // pred_check_branch
          %1006 = sbr.rel (%p1004) target = $region52
        $region51: #{tpu_custom_call.1} parent=43 // pred_region
          %s1007 = smul.u32 4, %s23
          %s1009 = ssub.s32 2048, 2048
          %1010 = vsyncadd %s1000, %s1009
          %s1011 = smul.addr %s1007, 4
          %s1012 = smul.addr %s1011, 128
          %s1013 = scalar_lea.hbm %s6, %s1012
          %s1014 = sshll.u32 %s1003, 4
          %s1015 = int_to_ptr.vmem [resolvable:$true] %s1014
          %1020 = dma.vmem_to_hbm [thread:$0]  %s1015, 2048, %s1013, %s1000, 128, 128, 8
        $region52: #{tpu_custom_call.1} parent=43 // pred_fallthru
          _
      $region44: #{tpu_custom_call.1} parent=5 // pred_fallthru
        _
      %p1021 = scmp.le.s32.totalorder 2, %s18
      // Predicated region
      $region53: #{tpu_custom_call.1} parent=5 // pred_check
        %p1022 = pneg %p1021
      $region54: #{tpu_custom_call.1} parent=5 // pred_check_branch
        %1024 = sbr.rel (%p1022) target = $region56
      $region55: #{tpu_custom_call.1} parent=5 // pred_region
        %s1025 = ssub.s32 %s18, 2
        // Predicated region
        $region57: #{tpu_custom_call.1} parent=55 // pred_check
          %p1026 = pneg %p188
        $region58: #{tpu_custom_call.1} parent=55 // pred_check_branch
          %1028 = sbr.rel (%p1026) target = $region60
        $region59: #{tpu_custom_call.1} parent=55 // pred_region
          %s1029 = sand.u32 %s173, 1
          %s1030 = scalar_lea.sflag [#allocation5], %s1029
          %s1031 = sand.u32 %s173, 1
          %s1032 = smul.addr %s1031, 128
          %s1033 = scalar_lea.vmem [#allocation6], %s1032
          %1034 = dma.done %s1030, 2048
        $region60: #{tpu_custom_call.1} parent=55 // pred_fallthru
          _
      $region56: #{tpu_custom_call.1} parent=5 // pred_fallthru
        _
    $region6: #{tpu_custom_call.1} parent=1 // loop_footer
      %s22 = sadd.s32 1, %s18
    $region7: #{tpu_custom_call.1} parent=1 // loop_footer_branch
      %17 = sbr.rel target = $region3
    $region8: #{tpu_custom_call.1} parent=1 // loop_exit
      _
    %1035 = vsyncpa [#allocation4], 1
    %s1036 = scalar_lea.sflag [#allocation4], 1
    %1037 = vsyncpa %s1036, 1
    %1038 = vsyncpa [#allocation5], 1
    %s1039 = scalar_lea.sflag [#allocation5], 1
    %1040 = vsyncpa %s1039, 1

</llo_original>
